<compile_context>
chip_gen: v5e
topology: v5e:2x2
jax: 0.10.0
libtpu: 0.0.40
codegen_flags: <defaults>
</compile_context>

<pallas_src>
import functools

import jax
import jax.numpy as jnp
from jax import lax
from jax.experimental import pallas as pl
from jax.experimental.pallas import tpu as pltpu


def _get_loss_kernel(i_ids_ref, j_ids_ref,                 # scalar-prefetch (SMEM)
                     pred_ij_ref, pred_ji_ref, tgt_ref,    # inputs
                     feat_i_ref, feat_j_ref,
                     out_ref,                              # per-pair partials
                     gram_ref, l1_ref,                     # VMEM scratch
                     *, inv_feat, multi_block):
    p = pl.program_id(0)
    k = pl.program_id(1)
    nk = pl.num_programs(1)
    i = i_ids_ref[p]
    j = j_ids_ref[p]

    # ---- per-pair init at the start of the k (feature) reduction ------------
    @pl.when(k == 0)
    def _():
        gram_ref[...] = jnp.zeros_like(gram_ref)
        l1_ref[...] = jnp.zeros_like(l1_ref)

    # ---- gram tile: F_i[:, kblk] @ F_j[:, kblk]^T, f32 MXU accumulate -------
    gram_ref[...] += lax.dot_general(
        feat_i_ref[...], feat_j_ref[...], (((1,), (1,)), ((), ())),
        preferred_element_type=jnp.float32)

    # ---- content (L1) partial: each trans_feat block counted exactly once ---
    # (only on diagonal pairs).  target broadcasts as a row (valid: D == B).
    @pl.when(i == j)
    def _():
        trow = tgt_ref[pl.ds(k, 1), :].astype(jnp.float32)           # (1, tb)
        l1_ref[...] += jnp.sum(
            jnp.abs(feat_i_ref[...].astype(jnp.float32) - trow))

    # ---- style partials + lane-dense per-pair output on the last k step -----
    @pl.when(k == nk - 1)
    def _():
        g = gram_ref[...] * inv_feat
        d_ij = g - pred_ij_ref[...].astype(jnp.float32)
        sty = jnp.sum(d_ij * d_ij)
        if multi_block:
            # Mirrored block of the symmetric gram: gram^T against pred(j, i).
            d_ji = g.T - pred_ji_ref[...].astype(jnp.float32)
            sty = sty + jnp.where(i != j, jnp.sum(d_ji * d_ji), 0.0)

        sub = lax.broadcasted_iota(jnp.int32, (8, 128), 0)
        lane = lax.broadcasted_iota(jnp.int32, (8, 128), 1)
        first = sub == 0
        out_ref[...] = (jnp.where(first & (lane == 0), l1_ref[...], 0.0)
                        + jnp.where(first & (lane == 1), sty, 0.0))


def _pick_tile(n):
    # Prefer >=256-wide tiles (full 256x256 MXU on v6e/v7x) and as few grid
    # steps as possible; 512 keeps the double-buffered working set ~10 MiB.
    for t in (512, 256, 128):
        if n >= t and n % t == 0:
            return t
    return n   # small / non-aligned batch: single full-extent block


def get_loss(pred, target, trans_feat, *, content_weight, style_weight):
    B, C = pred.shape
    Bf, D = trans_feat.shape
    assert Bf == B
    assert B == C == D, "reference broadcasting only type-checks when B == C == D"

    tb = _pick_tile(B)
    nb = B // tb
    assert nb * tb == B  # TODO(synk): pad B to a tile multiple for large non-aligned batches

    # Upper-triangle block pairs (gram symmetry).
    pairs = [(i, j) for i in range(nb) for j in range(i, nb)]
    n_pairs = len(pairs)
    i_ids = jnp.asarray([ij[0] for ij in pairs], dtype=jnp.int32)
    j_ids = jnp.asarray([ij[1] for ij in pairs], dtype=jnp.int32)

    # Target as f32, blocked along the feature axis so it stays fully resident
    # in VMEM (constant block index) and is row-indexed by the dynamic k.
    t_blk = target.astype(jnp.float32).reshape(nb, tb)

    kernel = functools.partial(_get_loss_kernel,
                               inv_feat=1.0 / D, multi_block=(nb > 1))

    # VMEM budget: 4 double-buffered (tb, tb) input tiles + gram scratch + small.
    pred_b = jnp.dtype(pred.dtype).itemsize
    feat_b = jnp.dtype(trans_feat.dtype).itemsize
    est = (2 * 2 * tb * tb * pred_b          # pred(i,j), pred(j,i), double-buffered
           + 2 * 2 * tb * tb * feat_b        # feat rows i / rows j, double-buffered
           + 2 * nb * tb * 4                 # resident target row
           + 2 * 8 * 128 * 4                 # per-pair output tile
           + tb * tb * 4 + 4096)             # gram scratch + slack
    assert est <= 44 * 1024 * 1024, f"tile {tb} would exceed the v7x VMEM budget"
    vmem_limit = int(min(max(est + (8 << 20), 16 << 20), 48 << 20))

    partials = pl.pallas_call(
        kernel,
        out_shape=jax.ShapeDtypeStruct((8 * n_pairs, 128), jnp.float32),
        grid_spec=pltpu.PrefetchScalarGridSpec(
            num_scalar_prefetch=2,
            grid=(n_pairs, nb),                                  # (block pair, feature block)
            in_specs=[
                pl.BlockSpec((tb, tb), lambda p, k, ii, jj: (ii[p], jj[p])),  # pred (i, j)
                pl.BlockSpec((tb, tb), lambda p, k, ii, jj: (jj[p], ii[p])),  # pred (j, i)
                pl.BlockSpec((nb, tb), lambda p, k, ii, jj: (0, 0)),          # target, resident
                pl.BlockSpec((tb, tb), lambda p, k, ii, jj: (ii[p], k)),      # feat rows i
                pl.BlockSpec((tb, tb), lambda p, k, ii, jj: (jj[p], k)),      # feat rows j
            ],
            out_specs=pl.BlockSpec((8, 128), lambda p, k, ii, jj: (p, 0)),
            scratch_shapes=[
                pltpu.VMEM((tb, tb), jnp.float32),   # gram tile accumulator
                pltpu.VMEM((1, 1), jnp.float32),     # per-pair L1 partial
            ],
        ),
        compiler_params=pltpu.CompilerParams(
            # Block pairs are independent (megacore-shardable on v7x); the
            # feature/contraction axis carries the per-pair gram accumulator.
            dimension_semantics=("parallel", "arbitrary"),
            vmem_limit_bytes=vmem_limit,
        ),
    )(i_ids, j_ids, pred, pred, t_blk, trans_feat, trans_feat)

    l1_sum = jnp.sum(partials[0::8, 0])
    sty_sum = jnp.sum(partials[0::8, 1])

    # NLL: O(B) gather in the wrapper (perf review) instead of O(tb^2) one-hot
    # work in the hot loop.
    logp = jnp.take_along_axis(pred.astype(jnp.float32),
                               target.astype(jnp.int32)[:, None], axis=1)
    nll = -jnp.mean(logp)

    content = l1_sum / (B * D)
    style = sty_sum / (B * C)
    return nll + content_weight * content + style_weight * style


def get_loss_ref(pred, target, trans_feat, *, content_weight, style_weight):
    """Plain-JAX reference of the (intended) PyTorch forward."""
    B, C = pred.shape
    D = trans_feat.shape[1]
    nll = -jnp.mean(pred[jnp.arange(B), target])
    content = jnp.mean(jnp.abs(trans_feat - target.astype(jnp.float32)[None, :]))
    gram = trans_feat @ trans_feat.T / D
    style = jnp.mean((gram - pred) ** 2)
    return nll + content_weight * content + style_weight * style


if __name__ == "__main__":
    # Deterministic "parameters" of GetLoss.__init__
    content_weight = 1.0
    style_weight = 0.5

    key = jax.random.PRNGKey(0)
    # B = 8: single tiny full-extent block.  B = 256: one 256-wide MXU tile.
    # B = 384: multi-block path (3 row blocks -> 6 upper-triangle pairs, 3 k steps).
    for B in (8, 256, 384):
        k1, k2, k3 = jax.random.split(jax.random.fold_in(key, B), 3)
        logits = jax.random.normal(k1, (B, B), dtype=jnp.float32)
        pred = jax.nn.log_softmax(logits, axis=-1)           # NLL expects log-probs
        target = jax.random.randint(k2, (B,), 0, B, dtype=jnp.int32)
        trans_feat = jax.random.normal(k3, (B, B), dtype=jnp.float32)

        out = get_loss(pred, target, trans_feat,
                       content_weight=content_weight, style_weight=style_weight)
        out = jax.block_until_ready(out)

        ref = get_loss_ref(pred, target, trans_feat,
                           content_weight=content_weight, style_weight=style_weight)
        assert jnp.allclose(out, ref, rtol=1e-3, atol=1e-3), (B, float(out), float(ref))

    print("KERNEL_OK")
</pallas_src>

<mosaic_0001>
module attributes {stable_mosaic.version = 11 : i64} {
  func.func @_get_loss_kernel(%arg0: i32, %arg1: i32, %arg2: memref<1xi32, #tpu.memory_space<smem>>, %arg3: memref<1xi32, #tpu.memory_space<smem>>, %arg4: memref<8x8xf32, #tpu.memory_space<vmem>>, %arg5: memref<8x8xf32, #tpu.memory_space<vmem>>, %arg6: memref<1x8xf32, #tpu.memory_space<vmem>>, %arg7: memref<8x8xf32, #tpu.memory_space<vmem>>, %arg8: memref<8x8xf32, #tpu.memory_space<vmem>>, %arg9: memref<8x128xf32, #tpu.memory_space<vmem>>, %arg10: memref<8x8xf32, #tpu.memory_space<vmem>>, %arg11: memref<1x1xf32, #tpu.memory_space<vmem>>) attributes {dimension_semantics = [#tpu.dimension_semantics<parallel>, #tpu.dimension_semantics<arbitrary>], iteration_bounds = array<i64: 1, 1>, scalar_prefetch = 2 : i64, scratch_operands = 2 : i64, tpu.core_type = #tpu.core_type<tc>, window_params = [{transform_indices = @transform_0, window_bounds = array<i64: 8, 8>}, {transform_indices = @transform_1, window_bounds = array<i64: 8, 8>}, {pipeline_mode = #tpu.pipeline_mode<synchronous>, transform_indices = @transform_2, window_bounds = array<i64: 1, 8>}, {transform_indices = @transform_3, window_bounds = array<i64: 8, 8>}, {transform_indices = @transform_4, window_bounds = array<i64: 8, 8>}, {transform_indices = @transform_5, window_bounds = array<i64: 8, 128>}]} {
    %0 = arith.index_cast %arg0 : i32 to index
    %1 = memref.load %arg2[%0] : memref<1xi32, #tpu.memory_space<smem>>
    %2 = arith.index_cast %arg0 : i32 to index
    %3 = memref.load %arg3[%2] : memref<1xi32, #tpu.memory_space<smem>>
    %c0_i32 = arith.constant 0 : i32
    %4 = arith.cmpi eq, %arg1, %c0_i32 : i32
    %5 = arith.extui %4 : i1 to i32
    %c0_i32_0 = arith.constant 0 : i32
    %6 = arith.cmpi ne, %5, %c0_i32_0 : i32
    scf.if %6 {
      %cst_11 = arith.constant 0.000000e+00 : f32
      %19 = vector.broadcast %cst_11 : f32 to vector<8x8xf32>
      %c0_12 = arith.constant 0 : index
      %c0_13 = arith.constant 0 : index
      %20 = vector.load %arg10[%c0_12, %c0_13] : memref<8x8xf32, #tpu.memory_space<vmem>>, vector<8x8xf32>
      tpu.vector_store %arg10[%c0_12, %c0_13], %19 {strides = array<i32>} : memref<8x8xf32, #tpu.memory_space<vmem>>, vector<8x8xf32>,
      %cst_14 = arith.constant 0.000000e+00 : f32
      %21 = vector.broadcast %cst_14 : f32 to vector<1x1xf32>
      %c0_15 = arith.constant 0 : index
      %c0_16 = arith.constant 0 : index
      %22 = vector.load %arg11[%c0_15, %c0_16] : memref<1x1xf32, #tpu.memory_space<vmem>>, vector<1x1xf32>
      tpu.vector_store %arg11[%c0_15, %c0_16], %21 {strides = array<i32>} : memref<1x1xf32, #tpu.memory_space<vmem>>, vector<1x1xf32>,
    } else {
    }
    %c0 = arith.constant 0 : index
    %c0_1 = arith.constant 0 : index
    %7 = vector.load %arg10[%c0, %c0_1] : memref<8x8xf32, #tpu.memory_space<vmem>>, vector<8x8xf32>
    %c0_2 = arith.constant 0 : index
    %c0_3 = arith.constant 0 : index
    %8 = vector.load %arg7[%c0_2, %c0_3] : memref<8x8xf32, #tpu.memory_space<vmem>>, vector<8x8xf32>
    %c0_4 = arith.constant 0 : index
    %c0_5 = arith.constant 0 : index
    %9 = vector.load %arg8[%c0_4, %c0_5] : memref<8x8xf32, #tpu.memory_space<vmem>>, vector<8x8xf32>
    %cst = arith.constant dense<0.000000e+00> : vector<8x8xf32>
    %10 = tpu.matmul %8, %9, %cst {dimension_numbers = #tpu.dot_dimension_numbers<[1], [1], [0], [0], [0, 0, 1, 0], [], []>} : vector<8x8xf32>, vector<8x8xf32>, vector<8x8xf32> -> vector<8x8xf32>
    %11 = arith.addf %7, %10 : vector<8x8xf32>
    %c0_6 = arith.constant 0 : index
    %c0_7 = arith.constant 0 : index
    %12 = vector.load %arg10[%c0_6, %c0_7] : memref<8x8xf32, #tpu.memory_space<vmem>>, vector<8x8xf32>
    tpu.vector_store %arg10[%c0_6, %c0_7], %11 {strides = array<i32>} : memref<8x8xf32, #tpu.memory_space<vmem>>, vector<8x8xf32>,
    %13 = arith.cmpi eq, %1, %3 : i32
    %14 = arith.extui %13 : i1 to i32
    %c0_i32_8 = arith.constant 0 : i32
    %15 = arith.cmpi ne, %14, %c0_i32_8 : i32
    scf.if %15 {
      %19 = arith.index_cast %arg1 : i32 to index
      %c0_11 = arith.constant 0 : index
      %20 = vector.load %arg6[%19, %c0_11] : memref<1x8xf32, #tpu.memory_space<vmem>>, vector<1x8xf32>
      %c0_12 = arith.constant 0 : index
      %c0_13 = arith.constant 0 : index
      %21 = vector.load %arg11[%c0_12, %c0_13] : memref<1x1xf32, #tpu.memory_space<vmem>>, vector<1x1xf32>
      %c0_14 = arith.constant 0 : index
      %c0_15 = arith.constant 0 : index
      %22 = vector.load %arg7[%c0_14, %c0_15] : memref<8x8xf32, #tpu.memory_space<vmem>>, vector<8x8xf32>
      %23 = vector.broadcast %20 : vector<1x8xf32> to vector<8x8xf32>
      %24 = arith.subf %22, %23 : vector<8x8xf32>
      %25 = math.absf %24 : vector<8x8xf32>
      %26 = vector.shape_cast %25 : vector<8x8xf32> to vector<1x8x8xf32>
      %cst_16 = arith.constant dense<0.000000e+00> : vector<1xf32>
      %27 = vector.multi_reduction <add>, %26, %cst_16 [1, 2] : vector<1x8x8xf32> to vector<1xf32>
      %28 = vector.shape_cast %27 : vector<1xf32> to vector<1x1x1xf32>
      %29 = vector.extract %28[0, 0, 0] : f32 from vector<1x1x1xf32>
      %30 = vector.broadcast %29 : f32 to vector<1x1xf32>
      %31 = arith.addf %21, %30 : vector<1x1xf32>
      %c0_17 = arith.constant 0 : index
      %c0_18 = arith.constant 0 : index
      %32 = vector.load %arg11[%c0_17, %c0_18] : memref<1x1xf32, #tpu.memory_space<vmem>>, vector<1x1xf32>
      tpu.vector_store %arg11[%c0_17, %c0_18], %31 {strides = array<i32>} : memref<1x1xf32, #tpu.memory_space<vmem>>, vector<1x1xf32>,
    } else {
    }
    %c0_i32_9 = arith.constant 0 : i32
    %16 = arith.cmpi eq, %arg1, %c0_i32_9 : i32
    %17 = arith.extui %16 : i1 to i32
    %c0_i32_10 = arith.constant 0 : i32
    %18 = arith.cmpi ne, %17, %c0_i32_10 : i32
    scf.if %18 {
      %c0_11 = arith.constant 0 : index
      %c0_12 = arith.constant 0 : index
      %19 = vector.load %arg10[%c0_11, %c0_12] : memref<8x8xf32, #tpu.memory_space<vmem>>, vector<8x8xf32>
      %cst_13 = arith.constant 1.250000e-01 : f32
      %20 = vector.broadcast %cst_13 : f32 to vector<8x8xf32>
      %21 = arith.mulf %19, %20 : vector<8x8xf32>
      %c0_14 = arith.constant 0 : index
      %c0_15 = arith.constant 0 : index
      %22 = vector.load %arg4[%c0_14, %c0_15] : memref<8x8xf32, #tpu.memory_space<vmem>>, vector<8x8xf32>
      %23 = arith.subf %21, %22 : vector<8x8xf32>
      %24 = arith.mulf %23, %23 : vector<8x8xf32>
      %25 = vector.shape_cast %24 : vector<8x8xf32> to vector<1x8x8xf32>
      %cst_16 = arith.constant dense<0.000000e+00> : vector<1xf32>
      %26 = vector.multi_reduction <add>, %25, %cst_16 [1, 2] : vector<1x8x8xf32> to vector<1xf32>
      %27 = vector.shape_cast %26 : vector<1xf32> to vector<1x1x1xf32>
      %28 = vector.extract %27[0, 0, 0] : f32 from vector<1x1x1xf32>
      %29 = tpu.iota {dimensions = array<i32: 0>} : vector<8x128xi32>
      %30 = tpu.iota {dimensions = array<i32: 1>} : vector<8x128xi32>
      %c0_i32_17 = arith.constant 0 : i32
      %31 = vector.broadcast %c0_i32_17 : i32 to vector<8x128xi32>
      %32 = arith.cmpi eq, %29, %31 : vector<8x128xi32>
      %c0_i32_18 = arith.constant 0 : i32
      %33 = vector.broadcast %c0_i32_18 : i32 to vector<8x128xi32>
      %34 = arith.cmpi eq, %30, %33 : vector<8x128xi32>
      %35 = arith.andi %32, %34 : vector<8x128xi1>
      %c0_19 = arith.constant 0 : index
      %c0_20 = arith.constant 0 : index
      %36 = vector.load %arg11[%c0_19, %c0_20] : memref<1x1xf32, #tpu.memory_space<vmem>>, vector<1x1xf32>
      %cst_21 = arith.constant 0.000000e+00 : f32
      %37 = vector.shape_cast %36 : vector<1x1xf32> to vector<1x1xf32>
      %38 = vector.broadcast %37 : vector<1x1xf32> to vector<8x128xf32>
      %39 = vector.broadcast %cst_21 : f32 to vector<8x128xf32>
      %40 = arith.select %35, %38, %39 : vector<8x128xi1>, vector<8x128xf32>
      %c1_i32 = arith.constant 1 : i32
      %41 = vector.broadcast %c1_i32 : i32 to vector<8x128xi32>
      %42 = arith.cmpi eq, %30, %41 : vector<8x128xi32>
      %43 = arith.andi %32, %42 : vector<8x128xi1>
      %cst_22 = arith.constant 0.000000e+00 : f32
      %44 = vector.broadcast %28 : f32 to vector<8x128xf32>
      %45 = vector.broadcast %cst_22 : f32 to vector<8x128xf32>
      %46 = arith.select %43, %44, %45 : vector<8x128xi1>, vector<8x128xf32>
      %47 = arith.addf %40, %46 : vector<8x128xf32>
      %c0_23 = arith.constant 0 : index
      %c0_24 = arith.constant 0 : index
      %48 = vector.load %arg9[%c0_23, %c0_24] : memref<8x128xf32, #tpu.memory_space<vmem>>, vector<8x128xf32>
      tpu.vector_store %arg9[%c0_23, %c0_24], %47 {strides = array<i32>} : memref<8x128xf32, #tpu.memory_space<vmem>>, vector<8x128xf32>,
    } else {
    }
    return
  }
  func.func @transform_0(%arg0: i32, %arg1: i32, %arg2: memref<1xi32, #tpu.memory_space<smem>>, %arg3: memref<1xi32, #tpu.memory_space<smem>>) -> (i32, i32) {
    %0 = arith.index_cast %arg0 : i32 to index
    %1 = memref.load %arg2[%0] : memref<1xi32, #tpu.memory_space<smem>>
    %2 = arith.index_cast %arg0 : i32 to index
    %3 = memref.load %arg3[%2] : memref<1xi32, #tpu.memory_space<smem>>
    %c0_i32 = arith.constant 0 : i32
    return %1, %3 : i32, i32
  }
  func.func @transform_1(%arg0: i32, %arg1: i32, %arg2: memref<1xi32, #tpu.memory_space<smem>>, %arg3: memref<1xi32, #tpu.memory_space<smem>>) -> (i32, i32) {
    %0 = arith.index_cast %arg0 : i32 to index
    %1 = memref.load %arg3[%0] : memref<1xi32, #tpu.memory_space<smem>>
    %2 = arith.index_cast %arg0 : i32 to index
    %3 = memref.load %arg2[%2] : memref<1xi32, #tpu.memory_space<smem>>
    %c0_i32 = arith.constant 0 : i32
    return %1, %3 : i32, i32
  }
  func.func @transform_2(%arg0: i32, %arg1: i32, %arg2: memref<1xi32, #tpu.memory_space<smem>>, %arg3: memref<1xi32, #tpu.memory_space<smem>>) -> (i32, i32) {
    %c0_i32 = arith.constant 0 : i32
    %c0_i32_0 = arith.constant 0 : i32
    %c0_i32_1 = arith.constant 0 : i32
    return %c0_i32, %c0_i32_0 : i32, i32
  }
  func.func @transform_3(%arg0: i32, %arg1: i32, %arg2: memref<1xi32, #tpu.memory_space<smem>>, %arg3: memref<1xi32, #tpu.memory_space<smem>>) -> (i32, i32) {
    %0 = arith.index_cast %arg0 : i32 to index
    %1 = memref.load %arg2[%0] : memref<1xi32, #tpu.memory_space<smem>>
    %c0_i32 = arith.constant 0 : i32
    return %1, %arg1 : i32, i32
  }
  func.func @transform_4(%arg0: i32, %arg1: i32, %arg2: memref<1xi32, #tpu.memory_space<smem>>, %arg3: memref<1xi32, #tpu.memory_space<smem>>) -> (i32, i32) {
    %0 = arith.index_cast %arg0 : i32 to index
    %1 = memref.load %arg3[%0] : memref<1xi32, #tpu.memory_space<smem>>
    %c0_i32 = arith.constant 0 : i32
    return %1, %arg1 : i32, i32
  }
  func.func @transform_5(%arg0: i32, %arg1: i32, %arg2: memref<1xi32, #tpu.memory_space<smem>>, %arg3: memref<1xi32, #tpu.memory_space<smem>>) -> (i32, i32) {
    %c0_i32 = arith.constant 0 : i32
    %c0_i32_0 = arith.constant 0 : i32
    return %arg0, %c0_i32 : i32, i32
  }
}

</mosaic_0001>

<llo_original>
// kernel: tpu_custom_call.1
$region0: #{tpu_custom_call.1}
  #allocation0 [shape = 'u32[]', space=smem, size = 0x4, offset = 0x4, fixed_abs, tag = 'smem constant byte address 0x4 - core index']
  #allocation1 [shape = 'u32[72,128]{1,0:T(1,128)}', space=vmem, size = 0x9000, scoped, tag = 'internal scratch']
  #allocation2 [shape = 'f32[8,8]{1,0:T(8,128)}', space=vmem, size = 0x1000, scoped, tag = 'scratch operand']
  #allocation3 [shape = 'f32[1,1]{1,0:T(1,128)}', space=vmem, size = 0x200, scoped, tag = 'scratch operand']
  #allocation4 [shape = 's32[1]{0}', space=sflag, size = 0x4, scoped, tag = 'scoped memory for tpu_custom_call.1']
  #allocation5 [shape = 's32[1]{0:T(128)S(6)}', space=smem, size = 0x200, scoped, tag = 'prefetched SMEM operand 0']
  #allocation6 [shape = 's32[1]{0:T(128)S(6)}', space=smem, size = 0x200, scoped, tag = 'prefetched SMEM operand 1']
  %s0 = inlined_call_operand.<no memory space> [shape: s32[1], index: 0, kind: input, shape index: {}]
  %s1 = inlined_call_operand.<no memory space> [shape: s32[1], index: 1, kind: input, shape index: {}]
  %s2 = inlined_call_operand.hbm [shape: f32[8,8], index: 2, kind: input, shape index: {}]
  %s3 = inlined_call_operand.hbm [shape: f32[8,8], index: 3, kind: input, shape index: {}]
  %s4 = inlined_call_operand.vmem [shape: f32[1,8], index: 4, kind: input, shape index: {}]
  %s5 = inlined_call_operand.hbm [shape: f32[8,8], index: 5, kind: input, shape index: {}]
  %s6 = inlined_call_operand.hbm [shape: f32[8,8], index: 6, kind: input, shape index: {}]
  %s7 = inlined_call_operand.hbm [shape: f32[8,128], index: 7, kind: output, shape index: {}]
  %s8 = sld [smem:[#allocation0]]
  $region58: #{tpu_custom_call.1} parent=0
    _
  %s10 = ssub.s32 1, %s8
  %s11 = scalar_select 0, %s10, %s8
  %12 = sst [smem:[#allocation5]] %s0
  %13 = sst [smem:[#allocation6]] %s1
  $region1: #{tpu_custom_call.1} parent=0
    #allocation7 [shape = 'u8[4096]{0}', space=vmem, size = 0x1000, scoped, tag = 'input window, operand 2, single buffered']
    #allocation8 [shape = 's32[1]{0}', space=sflag, size = 0x4, scoped, tag = 'scoped memory for tpu_custom_call.1']
    #allocation9 [shape = 's32[1]{0}', space=sflag, size = 0x4, scoped, tag = 'scoped memory for tpu_custom_call.1']
    #allocation10 [shape = 'u8[4096]{0}', space=vmem, size = 0x1000, scoped, tag = 'input window, operand 3, single buffered']
    #allocation11 [shape = 's32[1]{0}', space=sflag, size = 0x4, scoped, tag = 'scoped memory for tpu_custom_call.1']
    #allocation12 [shape = 'u8[4096]{0}', space=vmem, size = 0x1000, scoped, tag = 'input window, operand 5, single buffered']
    #allocation13 [shape = 'u8[4096]{0}', space=vmem, size = 0x1000, scoped, tag = 'input window, operand 6, single buffered']
    #allocation14 [shape = 's32[1]{0}', space=sflag, size = 0x4, scoped, tag = 'scoped memory for tpu_custom_call.1']
    #allocation15 [shape = 'u8[4096]{0}', space=vmem, size = 0x1000, scoped, tag = 'output window, operand 0, single buffered']
    %14 = vsyncpa [#allocation8], 0
    %15 = vsyncpa [#allocation11], 0
    %16 = vsyncpa [#allocation14], 0
    %17 = vsyncpa [#allocation9], 0
    // Predicated region
    $region2: #{tpu_custom_call.1} parent=1 // pred_check
      _
    $region3: #{tpu_custom_call.1} parent=1 // pred_check_branch
      %19 = sbr.rel (0) target = $region5
    $region4: #{tpu_custom_call.1} parent=1 // pred_region
      %s20 = sld [smem:[#allocation5]]
      %s21 = sld [smem:[#allocation6]]
      %23 = vsyncadd [#allocation8], 0
      %s24 = sadd.s32 %s21, %s20
      %s25 = smul.addr %s24, 8
      %s26 = scalar_lea.hbm %s2, %s25
      %s28 = sshll.u32 %s26, 4
      %s29 = int_to_ptr.hbm [resolvable:$true] %s28
      %s30 = sshll.u32 [#allocation7], 4
      %s31 = int_to_ptr.vmem [resolvable:$true] %s30
      %33 = dma.hbm_to_vmem [thread:$0]  %s29, 128, %s31, [#allocation8]
    $region5: #{tpu_custom_call.1} parent=1 // pred_fallthru
      _
    // Predicated region
    $region6: #{tpu_custom_call.1} parent=1 // pred_check
      _
    $region7: #{tpu_custom_call.1} parent=1 // pred_check_branch
      %35 = sbr.rel (0) target = $region9
    $region8: #{tpu_custom_call.1} parent=1 // pred_region
      %s36 = sld [smem:[#allocation6]]
      %s37 = sld [smem:[#allocation5]]
      %39 = vsyncadd [#allocation11], 0
      %s40 = sadd.s32 %s37, %s36
      %s41 = smul.addr %s40, 8
      %s42 = scalar_lea.hbm %s3, %s41
      %s44 = sshll.u32 %s42, 4
      %s45 = int_to_ptr.hbm [resolvable:$true] %s44
      %s46 = sshll.u32 [#allocation10], 4
      %s47 = int_to_ptr.vmem [resolvable:$true] %s46
      %49 = dma.hbm_to_vmem [thread:$0]  %s45, 128, %s47, [#allocation11]
    $region9: #{tpu_custom_call.1} parent=1 // pred_fallthru
      _
    // Predicated region
    $region10: #{tpu_custom_call.1} parent=1 // pred_check
      _
    $region11: #{tpu_custom_call.1} parent=1 // pred_check_branch
      %51 = sbr.rel (0) target = $region13
    $region12: #{tpu_custom_call.1} parent=1 // pred_region
      _
    $region13: #{tpu_custom_call.1} parent=1 // pred_fallthru
      _
    // Predicated region
    $region14: #{tpu_custom_call.1} parent=1 // pred_check
      _
    $region15: #{tpu_custom_call.1} parent=1 // pred_check_branch
      %53 = sbr.rel (0) target = $region17
    $region16: #{tpu_custom_call.1} parent=1 // pred_region
      %s54 = sld [smem:[#allocation5]]
      %56 = vsyncadd [#allocation11], 0
      %s57 = smul.addr %s54, 8
      %s58 = scalar_lea.hbm %s5, %s57
      %s60 = sshll.u32 %s58, 4
      %s61 = int_to_ptr.hbm [resolvable:$true] %s60
      %s62 = sshll.u32 [#allocation12], 4
      %s63 = int_to_ptr.vmem [resolvable:$true] %s62
      %65 = dma.hbm_to_vmem [thread:$0]  %s61, 128, %s63, [#allocation11]
    $region17: #{tpu_custom_call.1} parent=1 // pred_fallthru
      _
    // Predicated region
    $region18: #{tpu_custom_call.1} parent=1 // pred_check
      _
    $region19: #{tpu_custom_call.1} parent=1 // pred_check_branch
      %67 = sbr.rel (0) target = $region21
    $region20: #{tpu_custom_call.1} parent=1 // pred_region
      %s68 = sld [smem:[#allocation6]]
      %70 = vsyncadd [#allocation14], 0
      %s71 = smul.addr %s68, 8
      %s72 = scalar_lea.hbm %s6, %s71
      %s74 = sshll.u32 %s72, 4
      %s75 = int_to_ptr.hbm [resolvable:$true] %s74
      %s76 = sshll.u32 [#allocation13], 4
      %s77 = int_to_ptr.vmem [resolvable:$true] %s76
      %79 = dma.hbm_to_vmem [thread:$0]  %s75, 128, %s77, [#allocation14]
    $region21: #{tpu_custom_call.1} parent=1 // pred_fallthru
      _
    // Predicated region
    $region22: #{tpu_custom_call.1} parent=1 // pred_check
      _
    $region23: #{tpu_custom_call.1} parent=1 // pred_check_branch
      %81 = sbr.rel (0) target = $region25
    $region24: #{tpu_custom_call.1} parent=1 // pred_region
      %83 = dma.done [#allocation8], 128
    $region25: #{tpu_custom_call.1} parent=1 // pred_fallthru
      _
    // Predicated region
    $region26: #{tpu_custom_call.1} parent=1 // pred_check
      _
    $region27: #{tpu_custom_call.1} parent=1 // pred_check_branch
      %85 = sbr.rel (0) target = $region29
    $region28: #{tpu_custom_call.1} parent=1 // pred_region
      %87 = dma.done [#allocation11], 128
    $region29: #{tpu_custom_call.1} parent=1 // pred_fallthru
      _
    // Predicated region
    $region30: #{tpu_custom_call.1} parent=1 // pred_check
      _
    $region31: #{tpu_custom_call.1} parent=1 // pred_check_branch
      %89 = sbr.rel (0) target = $region33
    $region32: #{tpu_custom_call.1} parent=1 // pred_region
      %91 = dma.done [#allocation11], 128
    $region33: #{tpu_custom_call.1} parent=1 // pred_fallthru
      _
    // Predicated region
    $region34: #{tpu_custom_call.1} parent=1 // pred_check
      _
    $region35: #{tpu_custom_call.1} parent=1 // pred_check_branch
      %93 = sbr.rel (0) target = $region37
    $region36: #{tpu_custom_call.1} parent=1 // pred_region
      %95 = dma.done [#allocation14], 128
    $region37: #{tpu_custom_call.1} parent=1 // pred_fallthru
      _
    %s96 = sld [smem:[#allocation5]]
    %s97 = sld [smem:[#allocation6]]
    %s98 = sld [smem:[#allocation6]]
    %s99 = sld [smem:[#allocation5]]
    %s100 = sld [smem:[#allocation5]]
    %s101 = sld [smem:[#allocation6]]
    %s102 = sld [smem:[#allocation5]]
    %s103 = sld [smem:[#allocation6]]
    %p104 = scmp.eq.s32.totalorder 0, 0
    // Predicated region
    $region38: #{tpu_custom_call.1} parent=1 // pred_check
      %p105 = pneg %p104
    $region39: #{tpu_custom_call.1} parent=1 // pred_check_branch
      %107 = sbr.rel (%p105) target = $region41
    $region40: #{tpu_custom_call.1} parent=1 // pred_region
      %vm108 = vcmask 64512
      %109 = vst.msk [vmem:[#allocation2] sm:$0xff] %vm108, 0.0
      %vm110 = vcmask 0
      %111 = vst.msk [vmem:[#allocation3] sm:$0x1] %vm110, 0.0
    $region41: #{tpu_custom_call.1} parent=1 // pred_fallthru
      _
    %v112 = vld [vmem:[#allocation2] sm:$0xff]
    %v113 = vld [vmem:[#allocation12] sm:$0xff]
    %v114 = vld [vmem:[#allocation13] sm:$0xff]
    %vm115 = vcmask 64512
    %v117 = vsel %vm115, %v113, 0
    %v120 = vsel %vm115, %v114, 0
    %122 = vmatpush.xpose.msra.mxu0 0.0
    %123 = vmatpush.xpose.msra.mxu0 0.0
    %124 = vmatpush.xpose.msra.mxu0 0.0
    %125 = vmatpush.xpose.msra.mxu0 0.0
    %126 = vmatpush.xpose.msra.mxu0 0.0
    %127 = vmatpush.xpose.msra.mxu0 0.0
    %128 = vmatpush.xpose.msra.mxu0 0.0
    %129 = vmatpush.xpose.msra.mxu0 0.0
    %130 = vmatpush.xpose.msra.mxu0 0.0
    %131 = vmatpush.xpose.msra.mxu0 0.0
    %132 = vmatpush.xpose.msra.mxu0 0.0
    %133 = vmatpush.xpose.msra.mxu0 0.0
    %134 = vmatpush.xpose.msra.mxu0 0.0
    %135 = vmatpush.xpose.msra.mxu0 0.0
    %136 = vmatpush.xpose.msra.mxu0 0.0
    %137 = vmatpush.xpose.msra.mxu0 %v120
    %138 = vmatmul.f32.gmra.mxu0 %v117
    %v139 = vpop.f32.mrf.mxu0
    %v140 = vadd.f32 0.0, %v139
    %141 = vdwg.mxu0
    %v142 = vadd.f32 %v112, %v140
    %143 = vst.msk [vmem:[#allocation2] sm:$0xff] %vm115, %v142
    %p144 = scmp.eq.s32.totalorder %s102, %s103
    // Predicated region
    $region42: #{tpu_custom_call.1} parent=1 // pred_check
      %p145 = pneg %p144
    $region43: #{tpu_custom_call.1} parent=1 // pred_check_branch
      %147 = sbr.rel (%p145) target = $region45
    $region44: #{tpu_custom_call.1} parent=1 // pred_region
      %v148 = vld [vmem:[%s4] sm:$0x1]
      %v149 = vld [vmem:[#allocation3] sm:$0x1]
      %v150 = vld [vmem:[#allocation12] sm:$0xff]
      %v152 = vperm.slane %v148, 0
      %v154 = vsub.f32 %v150, %v152
      %v155 = vand.u32 2147483647, %v154
      %v156 = vsel %vm115, %v155, 0.0
      %157 = vadd.xlane.f32.xlu0 %v156
      %v158 = vpop.xlane.xlu0 %157
      %v159 = vrot.slane %v158, 4
      %v160 = vadd.f32 %v158, %v159
      %v161 = vrot.slane %v160, 2
      %v162 = vadd.f32 %v160, %v161
      %v163 = vrot.slane %v162, 1
      %v164 = vadd.f32 %v162, %v163
      %s165 = vtos %v164
      %v166 = vstv %s165
      %v167 = vadd.f32 %v149, %v166
      %vm168 = vcmask 0
      %169 = vst.msk [vmem:[#allocation3] sm:$0x1] %vm168, %v167
    $region45: #{tpu_custom_call.1} parent=1 // pred_fallthru
      _
    // Predicated region
    $region46: #{tpu_custom_call.1} parent=1 // pred_check
      %p170 = pneg %p104
    $region47: #{tpu_custom_call.1} parent=1 // pred_check_branch
      %172 = sbr.rel (%p170) target = $region49
    $region48: #{tpu_custom_call.1} parent=1 // pred_region
      %v173 = vld [vmem:[#allocation2] sm:$0xff]
      %v174 = vmul.f32 %v173, 0.125
      %v175 = vld [vmem:[#allocation7] sm:$0xff]
      %v176 = vsub.f32 %v174, %v175
      %v177 = vmul.f32 %v176, %v176
      %v178 = vsel %vm115, %v177, 0.0
      %179 = vadd.xlane.f32.xlu0 %v178
      %v180 = vpop.xlane.xlu0 %179
      %v181 = vrot.slane %v180, 4
      %v182 = vadd.f32 %v180, %v181
      %v183 = vrot.slane %v182, 2
      %v184 = vadd.f32 %v182, %v183
      %v185 = vrot.slane %v184, 1
      %v186 = vadd.f32 %v184, %v185
      %s187 = vtos %v186
      %v188 = vlaneseq
      %v189 = vshrl.u32 %v188, 7
      %v190 = vlaneseq
      %v191 = vand.u32 %v190, 127
      %vm192 = vcmp.eq.s32.totalorder %v189, 0
      %vm193 = vcmp.eq.s32.totalorder %v191, 0
      %vm194 = vmand %vm192, %vm193
      %v195 = vld [vmem:[#allocation3] sm:$0x1]
      %v197 = vperm.slane %v195, 0
      %198 = vset.pattern.permute.xlu0 0
      %199 = vperm.xlu0 %198, %v197
      %v200 = vpop.permute.xlu0 %199
      %v202 = vsel %vm194, %v200, 0.0
      %vm203 = vcmp.eq.s32.totalorder %v191, 1
      %vm204 = vmand %vm192, %vm203
      %v205 = vstv %s187
      %v206 = vsel %vm204, %v205, 0.0
      %v207 = vadd.f32 %v202, %v206
      %208 = vst [vmem:[#allocation15] sm:$0xff] %v207
    $region49: #{tpu_custom_call.1} parent=1 // pred_fallthru
      _
    // Predicated region
    $region50: #{tpu_custom_call.1} parent=1 // pred_check
      _
    $region51: #{tpu_custom_call.1} parent=1 // pred_check_branch
      %210 = sbr.rel (0) target = $region53
    $region52: #{tpu_custom_call.1} parent=1 // pred_region
      %212 = vsyncadd [#allocation9], 0
      %s214 = sshll.u32 [#allocation15], 4
      %s215 = int_to_ptr.vmem [resolvable:$true] %s214
      %s216 = sshll.u32 %s7, 4
      %s217 = int_to_ptr.hbm [resolvable:$true] %s216
      %219 = dma.vmem_to_hbm [thread:$0]  %s215, 128, %s217, [#allocation9]
    $region53: #{tpu_custom_call.1} parent=1 // pred_fallthru
      _
    // Predicated region
    $region54: #{tpu_custom_call.1} parent=1 // pred_check
      _
    $region55: #{tpu_custom_call.1} parent=1 // pred_check_branch
      %221 = sbr.rel (0) target = $region57
    $region56: #{tpu_custom_call.1} parent=1 // pred_region
      %223 = dma.done [#allocation9], 128
    $region57: #{tpu_custom_call.1} parent=1 // pred_fallthru
      _
    %224 = vsyncpa [#allocation8], 1
    %225 = vsyncpa [#allocation11], 1
    %226 = vsyncpa [#allocation14], 1
    %227 = vsyncpa [#allocation9], 1

</llo_original>
